<compile_context>
chip_gen: v7x
topology: tpu7x:2x2x1
jax: 0.10.0
libtpu: 0.0.40
codegen_flags: <defaults>
</compile_context>

<pallas_src>
import functools

import numpy as np
import jax
import jax.numpy as jnp
from jax.experimental import pallas as pl
from jax.experimental.pallas import tpu as pltpu

MAX_TILE_T = 512                      # output-time tile width upper bound (review: 128 -> 512)
HALO_LANES = 128                      # lane-aligned halo block taken from tile j+1
NORM_CHANNELS = 8
LEAKY_SLOPE = 0.01
NORM_EPS = 1e-5
VMEM_LIMIT_BYTES = 40 * 1024 * 1024   # well under v7x's 64 MiB physical VMEM
VMEM_BUDGET_BYTES = 32 * 1024 * 1024  # target used when deriving the per-layer tile size


def _pad_to(n, m):
    return ((n + m - 1) // m) * m


def _cdiv(a, b):
    return (a + b - 1) // b


def _pick_tile_t(needed_len, s_phases, ci, co, n_taps):
    """Largest 128-multiple time tile (<= MAX_TILE_T) whose pipeline buffers plus in-kernel
    intermediates stay inside the VMEM budget (re-derived per layer for v7x's 64 MiB)."""
    t = min(MAX_TILE_T, _pad_to(max(int(needed_len), 1), 128))
    while t > 128:
        est = 4 * (2 * s_phases * ci * (t + HALO_LANES)   # double-buffered main tile + halo
                   + 2 * n_taps * ci * co                 # weight slab (block-spec buffered)
                   + 2 * co * t                           # double-buffered output tile
                   + s_phases * ci * (t + HALO_LANES)     # merged tile+halo intermediate
                   + n_taps * ci * t                      # packed (K*CI, T) activation slab
                   + 2 * co * t)                          # matmul result / epilogue values
        if est <= VMEM_BUDGET_BYTES:
            break
        t //= 2
    return t


# ---------------------------------------------------------------------------
# Pallas kernels
# ---------------------------------------------------------------------------
def _corr_kernel(x_ref, xh_ref, w_ref, b_ref, *out_refs, taps, tile_t, act, stats_valid):
    """Channel-mixing multi-tap correlation for one (batch, time-tile) grid cell.

    x_ref  : (1, S, CI, T)   main time tile (auto-pipelined)
    xh_ref : (1, S, CI, 128) leading 128 columns of tile j+1 (lane-aligned halo, auto-pipelined)
    w_ref  : (CO, KT*CI)     all taps packed into one weight slab (resident across the grid)
    b_ref  : (CO, 1)         bias
    out    : (1, CO, T) conv output, plus (when stats_valid is not None) two (1,1,CO,1)
             masked partial sums feeding GroupNorm/BatchNorm without an extra HBM pass.
    """
    if stats_valid is None:
        (o_ref,) = out_refs
        sum_ref = sq_ref = None
    else:
        o_ref, sum_ref, sq_ref = out_refs

    # 128-aligned (S, CI, T+128) slab: main tile followed by the next tile's first 128 lanes.
    x_all = jnp.concatenate([x_ref[0], xh_ref[0]], axis=-1)

    # Pack the K shifted tap rows into one (KT*CI, T) slab so the whole tap reduction is a
    # single MXU matmul (one push, no K-deep (CO,T) accumulator live range).
    rows = [x_all[r, :, m:m + tile_t] for (r, m) in taps]
    xs = jnp.concatenate(rows, axis=0) if len(rows) > 1 else rows[0]

    acc = jnp.dot(w_ref[...], xs, preferred_element_type=jnp.float32)   # (CO, T), default precision
    acc = acc + b_ref[...]                                              # (CO, 1) broadcast

    if stats_valid is not None:
        # Masked per-tile, per-channel partial sums (padded lanes excluded from the stats).
        col = pl.program_id(1) * tile_t + jax.lax.broadcasted_iota(jnp.int32, acc.shape, 1)
        am = jnp.where(col < stats_valid, acc, 0.0)
        sum_ref[0, 0] = jnp.sum(am, axis=1, keepdims=True)
        sq_ref[0, 0] = jnp.sum(am * am, axis=1, keepdims=True)

    if act == "leaky_relu":
        acc = jnp.where(acc >= 0.0, acc, LEAKY_SLOPE * acc)
    o_ref[0] = acc.astype(o_ref.dtype)


def _affine_relu_kernel(x_ref, s_ref, t_ref, o_ref):
    """Per-(batch, channel) scale/shift + ReLU — the GroupNorm/BatchNorm normalize pass."""
    y = x_ref[0] * s_ref[0] + t_ref[0]
    o_ref[0] = jnp.maximum(y, 0.0).astype(o_ref.dtype)


# ---------------------------------------------------------------------------
# pallas_call wrappers
# ---------------------------------------------------------------------------
def _conv_correlate(x_ph, w_slab, bias_p, taps, n_tiles, tile_t, act, stats_valid):
    """x_ph: (N,S,CI,LQ) f32, LQ = n_tiles*tile_t + 128 -> (N,CO,n_tiles*tile_t) [+ stats]."""
    N, S, CI, LQ = x_ph.shape
    CO, KCI = w_slab.shape
    bpt = tile_t // 128                                   # halo block index multiplier

    kern = functools.partial(_corr_kernel, taps=tuple(taps), tile_t=tile_t,
                             act=act, stats_valid=stats_valid)

    if stats_valid is None:
        out_shape = jax.ShapeDtypeStruct((N, CO, n_tiles * tile_t), jnp.float32)
        out_specs = pl.BlockSpec((1, CO, tile_t), lambda n, j: (n, 0, j))
    else:
        out_shape = (jax.ShapeDtypeStruct((N, CO, n_tiles * tile_t), jnp.float32),
                     jax.ShapeDtypeStruct((N, n_tiles, CO, 1), jnp.float32),
                     jax.ShapeDtypeStruct((N, n_tiles, CO, 1), jnp.float32))
        out_specs = (pl.BlockSpec((1, CO, tile_t), lambda n, j: (n, 0, j)),
                     pl.BlockSpec((1, 1, CO, 1), lambda n, j: (n, j, 0, 0)),
                     pl.BlockSpec((1, 1, CO, 1), lambda n, j: (n, j, 0, 0)))

    flops = 2 * N * n_tiles * tile_t * CO * KCI
    bytes_accessed = 4 * (N * S * CI * LQ + N * n_tiles * S * CI * HALO_LANES
                          + w_slab.size + bias_p.size + N * CO * n_tiles * tile_t)

    return pl.pallas_call(
        kern,
        out_shape=out_shape,
        grid=(N, n_tiles),
        in_specs=[
            # Main tile + auto-pipelined lane-aligned halo from tile j+1:
            # no manual DMA, no exposed wait, no semaphore scratch.
            pl.BlockSpec((1, S, CI, tile_t), lambda n, j: (n, 0, 0, j)),
            pl.BlockSpec((1, S, CI, HALO_LANES), lambda n, j: (n, 0, 0, (j + 1) * bpt)),
            pl.BlockSpec((CO, KCI), lambda n, j: (0, 0)),       # weight slab (resident)
            pl.BlockSpec((CO, 1), lambda n, j: (0, 0)),         # bias (resident)
        ],
        out_specs=out_specs,
        compiler_params=pltpu.CompilerParams(
            dimension_semantics=("parallel", "parallel"),
            vmem_limit_bytes=VMEM_LIMIT_BYTES),
        cost_estimate=pl.CostEstimate(flops=flops, transcendentals=0,
                                      bytes_accessed=bytes_accessed),
    )(x_ph, x_ph, w_slab, bias_p)


def _affine_relu(z, scale, shift, tile_t):
    """z: (N, C, WP) f32, scale/shift: (N, C, 1) -> relu(z*scale + shift), tiled over time."""
    N, C, WP = z.shape
    n_tiles = WP // tile_t
    return pl.pallas_call(
        _affine_relu_kernel,
        out_shape=jax.ShapeDtypeStruct((N, C, WP), jnp.float32),
        grid=(N, n_tiles),
        in_specs=[
            pl.BlockSpec((1, C, tile_t), lambda n, j: (n, 0, j)),
            pl.BlockSpec((1, C, 1), lambda n, j: (n, 0, 0)),
            pl.BlockSpec((1, C, 1), lambda n, j: (n, 0, 0)),
        ],
        out_specs=pl.BlockSpec((1, C, tile_t), lambda n, j: (n, 0, j)),
        compiler_params=pltpu.CompilerParams(
            dimension_semantics=("parallel", "parallel"),
            vmem_limit_bytes=VMEM_LIMIT_BYTES),
    )(z, scale, shift)


# ---------------------------------------------------------------------------
# Glue: layout preparation
# ---------------------------------------------------------------------------
def _phase_split(x, stride, ci_pad, lq):
    """(N, Cin, W) -> (N, stride, ci_pad, lq) with out[n, r, c, q] = x[n, c, q*stride + r]."""
    N, Cin, W = x.shape
    need = lq * stride
    if need >= W:
        xp = jnp.pad(x, ((0, 0), (0, ci_pad - Cin), (0, need - W)))
    else:
        xp = jnp.pad(x[:, :, :need], ((0, 0), (0, ci_pad - Cin), (0, 0)))
    xp = xp.reshape(N, ci_pad, lq, stride)
    return jnp.transpose(xp, (0, 3, 1, 2))


def _pad_affine(a, c_pad):
    """(N, C) -> (N, c_pad, 1) with zero rows for padded channels."""
    N, c = a.shape
    return jnp.zeros((N, c_pad, 1), jnp.float32).at[:, :c, 0].set(a)


# ---------------------------------------------------------------------------
# The module
# ---------------------------------------------------------------------------
class ConvLayerPallas:
    """Pallas/TPU port of the Wave-U-Net ConvLayer forward pass."""

    def __init__(self, n_inputs, n_outputs, kernel_size, stride, conv_type,
                 transpose=False, *, key):
        assert conv_type in ("gn", "bn", "normal")
        self.n_inputs = n_inputs
        self.n_outputs = n_outputs
        self.kernel_size = kernel_size
        self.stride = stride
        self.conv_type = conv_type
        self.transpose = transpose

        kw, kb, kg, kbeta = jax.random.split(key, 4)
        if transpose:
            w_shape = (n_inputs, n_outputs, kernel_size)      # ConvTranspose1d layout
            fan = n_outputs * kernel_size
        else:
            w_shape = (n_outputs, n_inputs, kernel_size)      # Conv1d layout
            fan = n_inputs * kernel_size
        bound = 1.0 / float(np.sqrt(fan))
        self.weight = jax.random.uniform(kw, w_shape, jnp.float32, -bound, bound)
        self.bias = jax.random.uniform(kb, (n_outputs,), jnp.float32, -bound, bound)

        if conv_type in ("gn", "bn"):
            if conv_type == "gn":
                assert n_outputs % NORM_CHANNELS == 0
            self.gamma = 1.0 + 0.1 * jax.random.normal(kg, (n_outputs,), jnp.float32)
            self.beta = 0.1 * jax.random.normal(kbeta, (n_outputs,), jnp.float32)

        # Pre-pack all taps into a single (CO, KT*CI) weight slab once (host side) so the
        # whole tap reduction is one MXU matmul inside the kernel.
        ci = _pad_to(n_inputs, 8)
        w_np = np.asarray(self.weight, np.float32)
        b_np = np.asarray(self.bias, np.float32)
        if not transpose:
            cop = _pad_to(n_outputs, 8)
            kt = kernel_size
            w_slab = np.zeros((cop, kt * ci), np.float32)
            for k in range(kt):
                w_slab[:n_outputs, k * ci:k * ci + n_inputs] = w_np[:, :, k]
            bias_p = np.zeros((cop, 1), np.float32)
            bias_p[:n_outputs, 0] = b_np
            taps = tuple((k % stride, k // stride) for k in range(kt))
            self._co8 = None
            self._km = None
        else:
            # Polyphase decomposition of the transposed conv: output phase r uses the
            # sub-filter taps k = r + m*stride (flipped), folded into extra out-channels.
            km = _cdiv(kernel_size, stride)
            co8 = _pad_to(n_outputs, 8)
            cop = stride * co8
            w_slab = np.zeros((cop, km * ci), np.float32)
            for r in range(stride):
                for m in range(km):
                    kk = r + (km - 1 - m) * stride
                    if kk < kernel_size:
                        w_slab[r * co8:r * co8 + n_outputs,
                               m * ci:m * ci + n_inputs] = w_np[:, :, kk].T
            bias_p = np.zeros((cop, 1), np.float32)
            for r in range(stride):
                bias_p[r * co8:r * co8 + n_outputs, 0] = b_np
            taps = tuple((0, m) for m in range(km))
            self._co8 = co8
            self._km = km
        assert max(m for _, m in taps) <= HALO_LANES, "tap offset exceeds 128-lane halo"
        self._ci = ci
        self._cop = cop
        self._w_slab = jnp.asarray(w_slab)
        self._bias_p = jnp.asarray(bias_p)
        self._taps = taps

    # -- helpers ------------------------------------------------------------
    def _scale_shift(self, mean_c, inv_c):
        scale_c = self.gamma[None, :] * inv_c
        shift_c = self.beta[None, :] - mean_c * scale_c
        return scale_c, shift_c

    # -- forward ------------------------------------------------------------
    def __call__(self, x):
        N, cin, W = x.shape
        assert cin == self.n_inputs
        K, s, cout = self.kernel_size, self.stride, self.n_outputs
        act = "leaky_relu" if self.conv_type == "normal" else "linear"

        if not self.transpose:
            w_out = (W - K) // s + 1
            assert w_out >= 1
            tile_t = _pick_tile_t(w_out, s, self._ci, self._cop, len(self._taps))
            n_tiles = _cdiv(w_out, tile_t)
            lq = n_tiles * tile_t + HALO_LANES
            x_ph = _phase_split(x.astype(jnp.float32), s, self._ci, lq)

            need_stats = self.conv_type in ("gn", "bn")
            res = _conv_correlate(x_ph, self._w_slab, self._bias_p, self._taps,
                                  n_tiles, tile_t, act,
                                  w_out if need_stats else None)
            if self.conv_type == "normal":
                return res[:, :cout, :w_out]

            ypad, ssum, ssq = res                              # conv out + fused partial stats
            s_c = jnp.sum(ssum, axis=1)[:, :cout, 0]           # (N, cout) sum over valid cols
            q_c = jnp.sum(ssq, axis=1)[:, :cout, 0]            # (N, cout) sum of squares
            if self.conv_type == "gn":
                G = cout // NORM_CHANNELS
                cnt = float(NORM_CHANNELS * w_out)
                s_g = s_c.reshape(N, G, NORM_CHANNELS).sum(axis=2)
                q_g = q_c.reshape(N, G, NORM_CHANNELS).sum(axis=2)
                mean_g = s_g / cnt
                var_g = q_g / cnt - mean_g * mean_g
                inv_g = jax.lax.rsqrt(var_g + NORM_EPS)
                mean_c = jnp.repeat(mean_g, NORM_CHANNELS, axis=1)
                inv_c = jnp.repeat(inv_g, NORM_CHANNELS, axis=1)
            else:  # 'bn' — training-mode batch statistics
                cnt = float(N * w_out)
                mean = jnp.sum(s_c, axis=0) / cnt
                var = jnp.sum(q_c, axis=0) / cnt - mean * mean
                inv = jax.lax.rsqrt(var + NORM_EPS)
                mean_c = jnp.broadcast_to(mean[None, :], (N, cout))
                inv_c = jnp.broadcast_to(inv[None, :], (N, cout))
            scale_c, shift_c = self._scale_shift(mean_c, inv_c)
            scale_p = _pad_affine(scale_c, self._cop)
            shift_p = _pad_affine(shift_c, self._cop)
            out = _affine_relu(ypad, scale_p, shift_p, tile_t)
            return out[:, :cout, :w_out]

        # ---- transposed conv path ----
        km = self._km
        l_out = (W - 1) * s - K + 2                            # ConvTranspose1d, padding = K-1
        assert l_out >= 1
        q_len = W + km - 1
        tile_t = _pick_tile_t(q_len, 1, self._ci, self._cop, len(self._taps))
        n_tiles = _cdiv(q_len, tile_t)
        lq = n_tiles * tile_t + HALO_LANES
        xz = jnp.pad(x.astype(jnp.float32),
                     ((0, 0), (0, self._ci - cin), (km - 1, lq - (W + km - 1))))
        xz = xz[:, None, :, :]                                 # (N, 1, CI, LQ)
        ypad = _conv_correlate(xz, self._w_slab, self._bias_p, self._taps,
                               n_tiles, tile_t, act, None)     # (N, s*CO8, n_tiles*T)

        co8 = self._co8
        L = n_tiles * tile_t
        yph = ypad.reshape(N, s, co8, L)
        yfull = jnp.transpose(yph, (0, 2, 3, 1)).reshape(N, co8, L * s)
        y = yfull[:, :, K - 1:K - 1 + l_out]                   # exact cropped conv_transpose out

        if self.conv_type == "normal":
            return y[:, :cout, :]                              # leaky_relu already fused

        # TODO(synk): for the transposed path the GN/BN statistics are computed with one
        #             XLA pass over the re-interleaved output instead of being fused into
        #             the conv kernel (phase/crop-aware in-kernel masking not implemented).
        yv = y[:, :cout, :]
        if self.conv_type == "gn":
            G = cout // NORM_CHANNELS
            yg = yv.reshape(N, G, NORM_CHANNELS, l_out)
            mean_g = jnp.mean(yg, axis=(2, 3))
            var_g = jnp.mean(jnp.square(yg), axis=(2, 3)) - mean_g * mean_g
            inv_g = jax.lax.rsqrt(var_g + NORM_EPS)
            mean_c = jnp.repeat(mean_g, NORM_CHANNELS, axis=1)
            inv_c = jnp.repeat(inv_g, NORM_CHANNELS, axis=1)
        else:  # 'bn' — training-mode batch statistics
            mean = jnp.mean(yv, axis=(0, 2))
            var = jnp.mean(jnp.square(yv), axis=(0, 2)) - mean * mean
            inv = jax.lax.rsqrt(var + NORM_EPS)
            mean_c = jnp.broadcast_to(mean[None, :], (N, cout))
            inv_c = jnp.broadcast_to(inv[None, :], (N, cout))
        scale_c, shift_c = self._scale_shift(mean_c, inv_c)

        tile_a = min(MAX_TILE_T, _pad_to(l_out, 128))
        wp = _pad_to(l_out, tile_a)
        zpad = jnp.pad(y, ((0, 0), (0, 0), (0, wp - l_out)))
        scale_p = _pad_affine(scale_c, co8)
        shift_p = _pad_affine(shift_c, co8)
        out = _affine_relu(zpad, scale_p, shift_p, tile_a)
        return out[:, :cout, :l_out]


# ---------------------------------------------------------------------------
# Pure-numpy reference (PyTorch forward semantics)
# ---------------------------------------------------------------------------
def ref_conv1d(x, w, b, stride):
    n, ci, wlen = x.shape
    co, _, k = w.shape
    w_out = (wlen - k) // stride + 1
    y = np.zeros((n, co, w_out), np.float32)
    for t in range(w_out):
        seg = x[:, :, t * stride:t * stride + k]              # (N, Ci, K)
        y[:, :, t] = np.einsum("nck,ock->no", seg, w)
    return y + b[None, :, None]


def ref_conv_transpose1d(x, w, b, stride, padding):
    n, ci, wlen = x.shape
    _, co, k = w.shape
    l_full = (wlen - 1) * stride + k
    y = np.zeros((n, co, l_full), np.float32)
    for j in range(wlen):
        for kk in range(k):
            y[:, :, j * stride + kk] += x[:, :, j] @ w[:, :, kk]
    y = y[:, :, padding:l_full - padding]
    return y + b[None, :, None]


def ref_group_norm(y, gamma, beta, num_groups, eps=NORM_EPS):
    n, c, l = y.shape
    yg = y.reshape(n, num_groups, c // num_groups, l)
    mean = yg.mean(axis=(2, 3), keepdims=True)
    var = yg.var(axis=(2, 3), keepdims=True)
    yn = (yg - mean) / np.sqrt(var + eps)
    return yn.reshape(n, c, l) * gamma[None, :, None] + beta[None, :, None]


def ref_batch_norm_train(y, gamma, beta, eps=NORM_EPS):
    mean = y.mean(axis=(0, 2))
    var = y.var(axis=(0, 2))
    yn = (y - mean[None, :, None]) / np.sqrt(var + eps)[None, :, None]
    return yn * gamma[None, :, None] + beta[None, :, None]


def ref_conv_layer(x, layer):
    w = np.asarray(layer.weight, np.float32)
    b = np.asarray(layer.bias, np.float32)
    if layer.transpose:
        y = ref_conv_transpose1d(x, w, b, layer.stride, layer.kernel_size - 1)
    else:
        y = ref_conv1d(x, w, b, layer.stride)
    if layer.conv_type == "gn":
        y = ref_group_norm(y, np.asarray(layer.gamma), np.asarray(layer.beta),
                           layer.n_outputs // NORM_CHANNELS)
        return np.maximum(y, 0.0)
    if layer.conv_type == "bn":
        # TODO(synk): BatchNorm1d is modeled with training-mode batch statistics (fresh
        #             module forward); eval-mode running-stat normalization is not modeled.
        y = ref_batch_norm_train(y, np.asarray(layer.gamma), np.asarray(layer.beta))
        return np.maximum(y, 0.0)
    return np.where(y >= 0.0, y, LEAKY_SLOPE * y)


if __name__ == "__main__":
    key = jax.random.PRNGKey(0)
    cases = [
        dict(n_in=4, n_out=8, k=5, s=1, conv_type="gn", transpose=False, w=40),
        dict(n_in=6, n_out=10, k=5, s=2, conv_type="normal", transpose=False, w=43),
        dict(n_in=8, n_out=8, k=5, s=2, conv_type="gn", transpose=True, w=12),
        dict(n_in=4, n_out=8, k=5, s=2, conv_type="bn", transpose=False, w=33),
    ]
    for cfg in cases:
        key, k_layer, k_x = jax.random.split(key, 3)
        layer = ConvLayerPallas(cfg["n_in"], cfg["n_out"], cfg["k"], cfg["s"],
                                cfg["conv_type"], cfg["transpose"], key=k_layer)
        x = jax.random.normal(k_x, (2, cfg["n_in"], cfg["w"]), jnp.float32)
        out = jax.block_until_ready(layer(x))
        ref = ref_conv_layer(np.asarray(x, np.float32), layer)
        assert out.shape == ref.shape, (out.shape, ref.shape)
        # Tolerance covers default-precision (bf16-input) MXU matmuls vs the f64/f32 numpy
        # reference; structural (tap/halo/phase) bugs would produce O(1) errors.
        np.testing.assert_allclose(np.asarray(out), ref, rtol=2e-2, atol=2e-2)
    print("KERNEL_OK")
</pallas_src>

<mosaic_0001>
module attributes {stable_mosaic.version = 11 : i64} {
  func.func @_corr_kernel(%arg0: i32, %arg1: i32, %arg2: memref<1x1x8x128xf32, #tpu.memory_space<vmem>>, %arg3: memref<1x1x8x128xf32, #tpu.memory_space<vmem>>, %arg4: memref<8x40xf32, #tpu.memory_space<vmem>>, %arg5: memref<8x1xf32, #tpu.memory_space<vmem>>, %arg6: memref<1x8x128xf32, #tpu.memory_space<vmem>>, %arg7: memref<1x1x8x1xf32, #tpu.memory_space<vmem>>, %arg8: memref<1x1x8x1xf32, #tpu.memory_space<vmem>>) attributes {dimension_semantics = [#tpu.dimension_semantics<parallel>, #tpu.dimension_semantics<parallel>], iteration_bounds = array<i64: 2, 1>, scalar_prefetch = 0 : i64, scratch_operands = 0 : i64, tpu.core_type = #tpu.core_type<tc>, window_params = [{transform_indices = @transform_0, window_bounds = array<i64: 1, 1, 8, 128>}, {transform_indices = @transform_1, window_bounds = array<i64: 1, 1, 8, 128>}, {pipeline_mode = #tpu.pipeline_mode<synchronous>, transform_indices = @transform_2, window_bounds = array<i64: 8, 40>}, {pipeline_mode = #tpu.pipeline_mode<synchronous>, transform_indices = @transform_3, window_bounds = array<i64: 8, 1>}, {transform_indices = @transform_4, window_bounds = array<i64: 1, 8, 128>}, {transform_indices = @transform_5, window_bounds = array<i64: 1, 1, 8, 1>}, {transform_indices = @transform_6, window_bounds = array<i64: 1, 1, 8, 1>}]} {
    %c0 = arith.constant 0 : index
    %c0_0 = arith.constant 0 : index
    %c0_1 = arith.constant 0 : index
    %c0_2 = arith.constant 0 : index
    %0 = vector.load %arg2[%c0, %c0_0, %c0_1, %c0_2] : memref<1x1x8x128xf32, #tpu.memory_space<vmem>>, vector<1x1x8x128xf32>
    %1 = vector.shape_cast %0 : vector<1x1x8x128xf32> to vector<1x8x128xf32>
    %c0_3 = arith.constant 0 : index
    %c0_4 = arith.constant 0 : index
    %c0_5 = arith.constant 0 : index
    %c0_6 = arith.constant 0 : index
    %2 = vector.load %arg3[%c0_3, %c0_4, %c0_5, %c0_6] : memref<1x1x8x128xf32, #tpu.memory_space<vmem>>, vector<1x1x8x128xf32>
    %3 = vector.shape_cast %2 : vector<1x1x8x128xf32> to vector<1x8x128xf32>
    %4 = tpu.concatenate %1, %3 in 2 : vector<1x8x128xf32>, vector<1x8x128xf32> -> vector<1x8x256xf32>
    %5 = vector.extract_strided_slice %4 {offsets = [0, 0, 0], sizes = [1, 8, 128], strides = [1, 1, 1]} : vector<1x8x256xf32> to vector<1x8x128xf32>
    %6 = vector.shape_cast %5 : vector<1x8x128xf32> to vector<8x128xf32>
    %7 = vector.extract_strided_slice %4 {offsets = [0, 0, 1], sizes = [1, 8, 128], strides = [1, 1, 1]} : vector<1x8x256xf32> to vector<1x8x128xf32>
    %8 = vector.shape_cast %7 : vector<1x8x128xf32> to vector<8x128xf32>
    %9 = vector.extract_strided_slice %4 {offsets = [0, 0, 2], sizes = [1, 8, 128], strides = [1, 1, 1]} : vector<1x8x256xf32> to vector<1x8x128xf32>
    %10 = vector.shape_cast %9 : vector<1x8x128xf32> to vector<8x128xf32>
    %11 = vector.extract_strided_slice %4 {offsets = [0, 0, 3], sizes = [1, 8, 128], strides = [1, 1, 1]} : vector<1x8x256xf32> to vector<1x8x128xf32>
    %12 = vector.shape_cast %11 : vector<1x8x128xf32> to vector<8x128xf32>
    %13 = vector.extract_strided_slice %4 {offsets = [0, 0, 4], sizes = [1, 8, 128], strides = [1, 1, 1]} : vector<1x8x256xf32> to vector<1x8x128xf32>
    %14 = vector.shape_cast %13 : vector<1x8x128xf32> to vector<8x128xf32>
    %15 = tpu.concatenate %6, %8, %10, %12, %14 in 0 : vector<8x128xf32>, vector<8x128xf32>, vector<8x128xf32>, vector<8x128xf32>, vector<8x128xf32> -> vector<40x128xf32>
    %c0_7 = arith.constant 0 : index
    %c0_8 = arith.constant 0 : index
    %16 = vector.load %arg4[%c0_7, %c0_8] : memref<8x40xf32, #tpu.memory_space<vmem>>, vector<8x40xf32>
    %cst = arith.constant dense<0.000000e+00> : vector<8x128xf32>
    %17 = tpu.matmul %16, %15, %cst {dimension_numbers = #tpu.dot_dimension_numbers<[1], [0], [0], [1], [0, 0, 1, 1], [], []>} : vector<8x40xf32>, vector<40x128xf32>, vector<8x128xf32> -> vector<8x128xf32>
    %c0_9 = arith.constant 0 : index
    %c0_10 = arith.constant 0 : index
    %18 = vector.load %arg5[%c0_9, %c0_10] : memref<8x1xf32, #tpu.memory_space<vmem>>, vector<8x1xf32>
    %19 = vector.broadcast %18 : vector<8x1xf32> to vector<8x128xf32>
    %20 = arith.addf %17, %19 : vector<8x128xf32>
    %c128_i32 = arith.constant 128 : i32
    %21 = arith.muli %arg1, %c128_i32 : i32
    %22 = tpu.iota {dimensions = array<i32: 1>} : vector<8x128xi32>
    %23 = vector.broadcast %21 : i32 to vector<8x128xi32>
    %24 = arith.addi %23, %22 : vector<8x128xi32>
    %c36_i32 = arith.constant 36 : i32
    %25 = vector.broadcast %c36_i32 : i32 to vector<8x128xi32>
    %26 = arith.cmpi slt, %24, %25 : vector<8x128xi32>
    %cst_11 = arith.constant 0.000000e+00 : f32
    %27 = vector.broadcast %cst_11 : f32 to vector<8x128xf32>
    %28 = arith.select %26, %20, %27 : vector<8x128xi1>, vector<8x128xf32>
    %cst_12 = arith.constant dense<0.000000e+00> : vector<8xf32>
    %29 = vector.multi_reduction <add>, %28, %cst_12 [1] : vector<8x128xf32> to vector<8xf32>
    %30 = vector.shape_cast %29 : vector<8xf32> to vector<8x1xf32>
    %c0_13 = arith.constant 0 : index
    %c0_14 = arith.constant 0 : index
    %c0_15 = arith.constant 0 : index
    %c0_16 = arith.constant 0 : index
    %31 = vector.load %arg7[%c0_13, %c0_14, %c0_15, %c0_16] : memref<1x1x8x1xf32, #tpu.memory_space<vmem>>, vector<1x1x8x1xf32>
    %32 = vector.shape_cast %31 : vector<1x1x8x1xf32> to vector<8x1xf32>
    %33 = vector.shape_cast %30 : vector<8x1xf32> to vector<1x1x8x1xf32>
    tpu.vector_store %arg7[%c0_13, %c0_14, %c0_15, %c0_16], %33 {strides = array<i32>} : memref<1x1x8x1xf32, #tpu.memory_space<vmem>>, vector<1x1x8x1xf32>,
    %34 = arith.mulf %28, %28 : vector<8x128xf32>
    %cst_17 = arith.constant dense<0.000000e+00> : vector<8xf32>
    %35 = vector.multi_reduction <add>, %34, %cst_17 [1] : vector<8x128xf32> to vector<8xf32>
    %36 = vector.shape_cast %35 : vector<8xf32> to vector<8x1xf32>
    %c0_18 = arith.constant 0 : index
    %c0_19 = arith.constant 0 : index
    %c0_20 = arith.constant 0 : index
    %c0_21 = arith.constant 0 : index
    %37 = vector.load %arg8[%c0_18, %c0_19, %c0_20, %c0_21] : memref<1x1x8x1xf32, #tpu.memory_space<vmem>>, vector<1x1x8x1xf32>
    %38 = vector.shape_cast %37 : vector<1x1x8x1xf32> to vector<8x1xf32>
    %39 = vector.shape_cast %36 : vector<8x1xf32> to vector<1x1x8x1xf32>
    tpu.vector_store %arg8[%c0_18, %c0_19, %c0_20, %c0_21], %39 {strides = array<i32>} : memref<1x1x8x1xf32, #tpu.memory_space<vmem>>, vector<1x1x8x1xf32>,
    %c0_22 = arith.constant 0 : index
    %c0_23 = arith.constant 0 : index
    %c0_24 = arith.constant 0 : index
    %40 = vector.load %arg6[%c0_22, %c0_23, %c0_24] : memref<1x8x128xf32, #tpu.memory_space<vmem>>, vector<1x8x128xf32>
    %41 = vector.shape_cast %40 : vector<1x8x128xf32> to vector<8x128xf32>
    %42 = vector.shape_cast %20 : vector<8x128xf32> to vector<1x8x128xf32>
    tpu.vector_store %arg6[%c0_22, %c0_23, %c0_24], %42 {strides = array<i32>} : memref<1x8x128xf32, #tpu.memory_space<vmem>>, vector<1x8x128xf32>,
    return
  }
  func.func @transform_0(%arg0: i32, %arg1: i32) -> (i32, i32, i32, i32) {
    %c0_i32 = arith.constant 0 : i32
    %c0_i32_0 = arith.constant 0 : i32
    %c0_i32_1 = arith.constant 0 : i32
    return %arg0, %c0_i32, %c0_i32_0, %arg1 : i32, i32, i32, i32
  }
  func.func @transform_1(%arg0: i32, %arg1: i32) -> (i32, i32, i32, i32) {
    %c1_i32 = arith.constant 1 : i32
    %0 = arith.addi %arg1, %c1_i32 : i32
    %c1_i32_0 = arith.constant 1 : i32
    %1 = arith.muli %0, %c1_i32_0 : i32
    %c0_i32 = arith.constant 0 : i32
    %c0_i32_1 = arith.constant 0 : i32
    %c0_i32_2 = arith.constant 0 : i32
    return %arg0, %c0_i32, %c0_i32_1, %1 : i32, i32, i32, i32
  }
  func.func @transform_2(%arg0: i32, %arg1: i32) -> (i32, i32) {
    %c0_i32 = arith.constant 0 : i32
    %c0_i32_0 = arith.constant 0 : i32
    %c0_i32_1 = arith.constant 0 : i32
    return %c0_i32, %c0_i32_0 : i32, i32
  }
  func.func @transform_3(%arg0: i32, %arg1: i32) -> (i32, i32) {
    %c0_i32 = arith.constant 0 : i32
    %c0_i32_0 = arith.constant 0 : i32
    %c0_i32_1 = arith.constant 0 : i32
    return %c0_i32, %c0_i32_0 : i32, i32
  }
  func.func @transform_4(%arg0: i32, %arg1: i32) -> (i32, i32, i32) {
    %c0_i32 = arith.constant 0 : i32
    %c0_i32_0 = arith.constant 0 : i32
    return %arg0, %c0_i32, %arg1 : i32, i32, i32
  }
  func.func @transform_5(%arg0: i32, %arg1: i32) -> (i32, i32, i32, i32) {
    %c0_i32 = arith.constant 0 : i32
    %c0_i32_0 = arith.constant 0 : i32
    %c0_i32_1 = arith.constant 0 : i32
    return %arg0, %arg1, %c0_i32, %c0_i32_0 : i32, i32, i32, i32
  }
  func.func @transform_6(%arg0: i32, %arg1: i32) -> (i32, i32, i32, i32) {
    %c0_i32 = arith.constant 0 : i32
    %c0_i32_0 = arith.constant 0 : i32
    %c0_i32_1 = arith.constant 0 : i32
    return %arg0, %arg1, %c0_i32, %c0_i32_0 : i32, i32, i32, i32
  }
}

</mosaic_0001>

<llo_original>
// kernel: tpu_custom_call.1
$region0: #{tpu_custom_call.1}
  #allocation0 [shape = 'u32[]', space=smem, size = 0x4, offset = 0x4, fixed_abs, tag = 'smem constant byte address 0x4 - core index']
  #allocation1 [shape = 'u32[144,128]{1,0:T(1,128)}', space=vmem, size = 0x12000, scoped, tag = 'internal scratch']
  %s0 = inlined_call_operand.hbm [shape: f32[2,1,8,256], index: 0, kind: input, shape index: {}]
  %s1 = inlined_call_operand.hbm [shape: f32[2,1,8,256], index: 1, kind: input, shape index: {}]
  %s2 = inlined_call_operand.vmem [shape: f32[8,40], index: 2, kind: input, shape index: {}]
  %s3 = inlined_call_operand.vmem [shape: f32[8,1], index: 3, kind: input, shape index: {}]
  %s4 = inlined_call_operand.hbm [shape: f32[2,8,128], index: 4, kind: output, shape index: {0}]
  %s5 = inlined_call_operand.vmem [shape: f32[2,1,8,1], index: 5, kind: output, shape index: {1}]
  %s6 = inlined_call_operand.vmem [shape: f32[2,1,8,1], index: 6, kind: output, shape index: {2}]
  %7 = xla_tuple %s4, %s5, %s6
  %s8 = sld [smem:[#allocation0]]
  $region73: #{tpu_custom_call.1} parent=0
    _
  %s10 = ssub.s32 1, %s8
  %s11 = scalar_select 0, %s10, %s8
  $region1: #{tpu_custom_call.1} parent=0
    #allocation2 [shape = 'u8[8192]{0}', space=vmem, size = 0x2000, scoped, tag = 'input window, operand 0']
    #allocation3 [shape = 's32[2]{0}', space=sflag, size = 0x8, scoped, tag = 'scoped memory for tpu_custom_call.1']
    #allocation4 [shape = 's32[2]{0}', space=sflag, size = 0x8, scoped, tag = 'scoped memory for tpu_custom_call.1']
    #allocation5 [shape = 'u8[8192]{0}', space=vmem, size = 0x2000, scoped, tag = 'input window, operand 1']
    #allocation6 [shape = 's32[2]{0}', space=sflag, size = 0x8, scoped, tag = 'scoped memory for tpu_custom_call.1']
    #allocation7 [shape = 'u8[8192]{0}', space=vmem, size = 0x2000, scoped, tag = 'output window, operand 0']
    %12 = vsyncpa [#allocation3], 0
    %s13 = scalar_lea.sflag [#allocation3], 1
    %14 = vsyncpa %s13, 0
    %15 = vsyncpa [#allocation6], 0
    %s16 = scalar_lea.sflag [#allocation6], 1
    %17 = vsyncpa %s16, 0
    %18 = vsyncpa [#allocation4], 0
    %s19 = scalar_lea.sflag [#allocation4], 1
    %20 = vsyncpa %s19, 0
    loop: start=0, step=1, limit=4
    $region2: #{tpu_custom_call.1} parent=1 // loop_pre_header
      _
    $region3: #{tpu_custom_call.1} parent=1 // loop_header
      %s22 = sphi 0, %s26
      %p23 = scmp.ge.s32.totalorder %s22, 4
      %s29 = sphi 0, %s41
      %s30 = sphi 0, %s37
      %s31 = sphi 0, %s29
      %s32 = sphi 0, %s30
      %s33 = sphi 0, %s31
      %s34 = sphi 0, %s32
      %s46 = sphi 0, %s48
      %s49 = sphi 0, %s46
      %s50 = sphi 0, %s49
      %s66 = sphi 0, %s50
      %s76 = sphi 0, %s78
      %s79 = sphi 0, %s76
      %s80 = sphi 0, %s79
      %s96 = sphi 0, %s80
      %s100 = sphi 0, %s100
      %s102 = sphi 0, %s100
      %s103 = sphi 0, %s102
      %s117 = sphi 0, %s103
      %s121 = sphi 0, %s121
      %s123 = sphi 0, %s121
      %s124 = sphi 0, %s123
      %s138 = sphi 0, %s124
      %s146 = sphi 0, %s148
      %s149 = sphi 0, %s146
      %s150 = sphi 0, %s149
      %s166 = sphi 0, %s150
      %s174 = sphi 0, %s176
      %s177 = sphi 0, %s174
      %s178 = sphi 0, %s177
      %s194 = sphi 0, %s178
      %s202 = sphi 0, %s204
      %s205 = sphi 0, %s202
      %s206 = sphi 0, %s205
      %s222 = sphi 0, %s206
    $region4: #{tpu_custom_call.1} parent=1 // loop_header_branch
      %25 = sbr.rel (%p23) target = $region8
    $region5: #{tpu_custom_call.1} parent=1 // loop_body
      %s27 = ssub.s32 %s22, 1
      %s28 = ssub.s32 %s22, 2
      %s35 = sadd.s32 1, %s30
      %p36 = scmp.ge.s32.totalorder %s35, 1
      %s37 = scalar_select %p36, 0, %s35
      %s38 = sadd.s32 1, %s29
      %s39 = scalar_select %p36, %s38, %s29
      %p40 = scmp.ge.s32.totalorder %s39, 2
      %s41 = scalar_select %p40, 0, %s39
      %s42 = ssub.s32 %s29, %s41
      %s43 = ssub.s32 %s30, %s37
      %s44 = sor.u32 %s42, %s43
      %p45 = scmp.eq.s32.totalorder %s44, 0
      %s47 = sadd.s32 %s46, 1
      %s48 = scalar_select %p45, %s46, %s47
      %p51 = pneg %p45
      %p52 = scmp.eq.s32.totalorder %s22, 1
      %p53 = por %p51, %p52
      %p54 = scmp.ne.s32.totalorder %s46, %s49
      %p55 = scmp.eq.s32.totalorder %s22, 0
      %p56 = por %p54, %p55
      %p57 = scmp.ne.s32.totalorder %s46, %s49
      %p58 = scmp.eq.s32.totalorder %s27, 1
      %p59 = por %p57, %p58
      %p60 = scmp.ne.s32.totalorder %s49, %s50
      %p61 = scmp.eq.s32.totalorder %s27, 0
      %p62 = por %p60, %p61
      %p63 = scmp.ne.s32.totalorder %s49, %s50
      %p64 = scmp.eq.s32.totalorder %s28, 1
      %p65 = por %p63, %p64
      %p67 = scmp.ne.s32.totalorder %s50, %s66
      %p68 = scmp.eq.s32.totalorder %s28, 0
      %p69 = por %p67, %p68
      %s70 = sadd.s32 %s30, 1
      %s71 = sadd.s32 %s37, 1
      %s72 = ssub.s32 %s29, %s41
      %s73 = ssub.s32 %s70, %s71
      %s74 = sor.u32 %s72, %s73
      %p75 = scmp.eq.s32.totalorder %s74, 0
      %s77 = sadd.s32 %s76, 1
      %s78 = scalar_select %p75, %s76, %s77
      %p81 = pneg %p75
      %p82 = scmp.eq.s32.totalorder %s22, 1
      %p83 = por %p81, %p82
      %p84 = scmp.ne.s32.totalorder %s76, %s79
      %p85 = scmp.eq.s32.totalorder %s22, 0
      %p86 = por %p84, %p85
      %p87 = scmp.ne.s32.totalorder %s76, %s79
      %p88 = scmp.eq.s32.totalorder %s27, 1
      %p89 = por %p87, %p88
      %p90 = scmp.ne.s32.totalorder %s79, %s80
      %p91 = scmp.eq.s32.totalorder %s27, 0
      %p92 = por %p90, %p91
      %p93 = scmp.ne.s32.totalorder %s79, %s80
      %p94 = scmp.eq.s32.totalorder %s28, 1
      %p95 = por %p93, %p94
      %p97 = scmp.ne.s32.totalorder %s80, %s96
      %p98 = scmp.eq.s32.totalorder %s28, 0
      %p99 = por %p97, %p98
      %s101 = sadd.s32 %s100, 1
      %p104 = scmp.eq.s32.totalorder %s22, 1
      %p105 = scmp.ne.s32.totalorder %s100, %s102
      %p106 = scmp.eq.s32.totalorder %s22, 0
      %p107 = por %p105, %p106
      %p108 = scmp.ne.s32.totalorder %s100, %s102
      %p109 = scmp.eq.s32.totalorder %s27, 1
      %p110 = por %p108, %p109
      %p111 = scmp.ne.s32.totalorder %s102, %s103
      %p112 = scmp.eq.s32.totalorder %s27, 0
      %p113 = por %p111, %p112
      %p114 = scmp.ne.s32.totalorder %s102, %s103
      %p115 = scmp.eq.s32.totalorder %s28, 1
      %p116 = por %p114, %p115
      %p118 = scmp.ne.s32.totalorder %s103, %s117
      %p119 = scmp.eq.s32.totalorder %s28, 0
      %p120 = por %p118, %p119
      %s122 = sadd.s32 %s121, 1
      %p125 = scmp.eq.s32.totalorder %s22, 1
      %p126 = scmp.ne.s32.totalorder %s121, %s123
      %p127 = scmp.eq.s32.totalorder %s22, 0
      %p128 = por %p126, %p127
      %p129 = scmp.ne.s32.totalorder %s121, %s123
      %p130 = scmp.eq.s32.totalorder %s27, 1
      %p131 = por %p129, %p130
      %p132 = scmp.ne.s32.totalorder %s123, %s124
      %p133 = scmp.eq.s32.totalorder %s27, 0
      %p134 = por %p132, %p133
      %p135 = scmp.ne.s32.totalorder %s123, %s124
      %p136 = scmp.eq.s32.totalorder %s28, 1
      %p137 = por %p135, %p136
      %p139 = scmp.ne.s32.totalorder %s124, %s138
      %p140 = scmp.eq.s32.totalorder %s28, 0
      %p141 = por %p139, %p140
      %s142 = ssub.s32 %s29, %s41
      %s143 = ssub.s32 %s30, %s37
      %s144 = sor.u32 %s142, %s143
      %p145 = scmp.eq.s32.totalorder %s144, 0
      %s147 = sadd.s32 %s146, 1
      %s148 = scalar_select %p145, %s146, %s147
      %p151 = pneg %p145
      %p152 = scmp.eq.s32.totalorder %s22, 1
      %p153 = por %p151, %p152
      %p154 = scmp.ne.s32.totalorder %s146, %s149
      %p155 = scmp.eq.s32.totalorder %s22, 0
      %p156 = por %p154, %p155
      %p157 = scmp.ne.s32.totalorder %s146, %s149
      %p158 = scmp.eq.s32.totalorder %s27, 1
      %p159 = por %p157, %p158
      %p160 = scmp.ne.s32.totalorder %s149, %s150
      %p161 = scmp.eq.s32.totalorder %s27, 0
      %p162 = por %p160, %p161
      %p163 = scmp.ne.s32.totalorder %s149, %s150
      %p164 = scmp.eq.s32.totalorder %s28, 1
      %p165 = por %p163, %p164
      %p167 = scmp.ne.s32.totalorder %s150, %s166
      %p168 = scmp.eq.s32.totalorder %s28, 0
      %p169 = por %p167, %p168
      %s170 = ssub.s32 %s29, %s41
      %s171 = ssub.s32 %s30, %s37
      %s172 = sor.u32 %s170, %s171
      %p173 = scmp.eq.s32.totalorder %s172, 0
      %s175 = sadd.s32 %s174, 1
      %s176 = scalar_select %p173, %s174, %s175
      %p179 = pneg %p173
      %p180 = scmp.eq.s32.totalorder %s22, 1
      %p181 = por %p179, %p180
      %p182 = scmp.ne.s32.totalorder %s174, %s177
      %p183 = scmp.eq.s32.totalorder %s22, 0
      %p184 = por %p182, %p183
      %p185 = scmp.ne.s32.totalorder %s174, %s177
      %p186 = scmp.eq.s32.totalorder %s27, 1
      %p187 = por %p185, %p186
      %p188 = scmp.ne.s32.totalorder %s177, %s178
      %p189 = scmp.eq.s32.totalorder %s27, 0
      %p190 = por %p188, %p189
      %p191 = scmp.ne.s32.totalorder %s177, %s178
      %p192 = scmp.eq.s32.totalorder %s28, 1
      %p193 = por %p191, %p192
      %p195 = scmp.ne.s32.totalorder %s178, %s194
      %p196 = scmp.eq.s32.totalorder %s28, 0
      %p197 = por %p195, %p196
      %s198 = ssub.s32 %s29, %s41
      %s199 = ssub.s32 %s30, %s37
      %s200 = sor.u32 %s198, %s199
      %p201 = scmp.eq.s32.totalorder %s200, 0
      %s203 = sadd.s32 %s202, 1
      %s204 = scalar_select %p201, %s202, %s203
      %p207 = pneg %p201
      %p208 = scmp.eq.s32.totalorder %s22, 1
      %p209 = por %p207, %p208
      %p210 = scmp.ne.s32.totalorder %s202, %s205
      %p211 = scmp.eq.s32.totalorder %s22, 0
      %p212 = por %p210, %p211
      %p213 = scmp.ne.s32.totalorder %s202, %s205
      %p214 = scmp.eq.s32.totalorder %s27, 1
      %p215 = por %p213, %p214
      %p216 = scmp.ne.s32.totalorder %s205, %s206
      %p217 = scmp.eq.s32.totalorder %s27, 0
      %p218 = por %p216, %p217
      %p219 = scmp.ne.s32.totalorder %s205, %s206
      %p220 = scmp.eq.s32.totalorder %s28, 1
      %p221 = por %p219, %p220
      %p223 = scmp.ne.s32.totalorder %s206, %s222
      %p224 = scmp.eq.s32.totalorder %s28, 0
      %p225 = por %p223, %p224
      %p226 = scmp.le.s32.totalorder 1, %s22
      %p227 = scmp.lt.s32.totalorder %s22, 3
      %p228 = pnand %p226, %p227
      %p229 = pneg %p228
      // Predicated region
      $region9: #{tpu_custom_call.1} parent=5 // pred_check
        _
      $region10: #{tpu_custom_call.1} parent=5 // pred_check_branch
        %231 = sbr.rel (%p228) target = $region12
      $region11: #{tpu_custom_call.1} parent=5 // pred_region
        %s232 = ssub.s32 %s22, 1
        // Predicated region
        $region13: #{tpu_custom_call.1} parent=11 // pred_check
          %p233 = pneg %p113
        $region14: #{tpu_custom_call.1} parent=11 // pred_check_branch
          %235 = sbr.rel (%p233) target = $region16
        $region15: #{tpu_custom_call.1} parent=11 // pred_region
          _
        $region16: #{tpu_custom_call.1} parent=11 // pred_fallthru
          _
        // Predicated region
        $region17: #{tpu_custom_call.1} parent=11 // pred_check
          %p236 = pneg %p134
        $region18: #{tpu_custom_call.1} parent=11 // pred_check_branch
          %238 = sbr.rel (%p236) target = $region20
        $region19: #{tpu_custom_call.1} parent=11 // pred_region
          _
        $region20: #{tpu_custom_call.1} parent=11 // pred_fallthru
          _
      $region12: #{tpu_custom_call.1} parent=5 // pred_fallthru
        _
      %p239 = scmp.lt.s32.totalorder %s22, 2
      // Predicated region
      $region21: #{tpu_custom_call.1} parent=5 // pred_check
        %p240 = pneg %p239
      $region22: #{tpu_custom_call.1} parent=5 // pred_check_branch
        %242 = sbr.rel (%p240) target = $region24
      $region23: #{tpu_custom_call.1} parent=5 // pred_region
        // Predicated region
        $region25: #{tpu_custom_call.1} parent=23 // pred_check
          %p243 = pneg %p56
        $region26: #{tpu_custom_call.1} parent=23 // pred_check_branch
          %245 = sbr.rel (%p243) target = $region28
        $region27: #{tpu_custom_call.1} parent=23 // pred_region
          %s246 = sand.u32 %s46, 1
          %s247 = scalar_lea.sflag [#allocation3], %s246
          %s248 = sand.u32 %s46, 1
          %s249 = smul.addr %s248, 8
          %s250 = scalar_lea.vmem [#allocation2], %s249
          %s252 = ssub.s32 128, 128
          %253 = vsyncadd %s247, %s252
          %s254 = smul.addr %s29, 2
          %s255 = sadd.s32 %s30, %s254
          %s256 = smul.addr %s255, 128
          %s257 = scalar_lea.hbm %s0, %s256
          %s259 = sshll.u32 %s250, 4
          %s260 = int_to_ptr.vmem [resolvable:$true] %s259
          %262 = dma.hbm_to_vmem [thread:$0]  %s257, 128, %s260, %s247
        $region28: #{tpu_custom_call.1} parent=23 // pred_fallthru
          _
        // Predicated region
        $region29: #{tpu_custom_call.1} parent=23 // pred_check
          %p263 = pneg %p86
        $region30: #{tpu_custom_call.1} parent=23 // pred_check_branch
          %265 = sbr.rel (%p263) target = $region32
        $region31: #{tpu_custom_call.1} parent=23 // pred_region
          %s266 = sand.u32 %s76, 1
          %s267 = scalar_lea.sflag [#allocation6], %s266
          %s268 = sand.u32 %s76, 1
          %s269 = smul.addr %s268, 8
          %s270 = scalar_lea.vmem [#allocation5], %s269
          %s271 = sadd.s32 %s30, 1
          %s273 = ssub.s32 128, 128
          %274 = vsyncadd %s267, %s273
          %s275 = smul.addr %s29, 2
          %s276 = sadd.s32 %s271, %s275
          %s277 = smul.addr %s276, 128
          %s278 = scalar_lea.hbm %s1, %s277
          %s280 = sshll.u32 %s270, 4
          %s281 = int_to_ptr.vmem [resolvable:$true] %s280
          %283 = dma.hbm_to_vmem [thread:$0]  %s278, 128, %s281, %s267
        $region32: #{tpu_custom_call.1} parent=23 // pred_fallthru
          _
      $region24: #{tpu_custom_call.1} parent=5 // pred_fallthru
        _
      %p284 = scmp.le.s32.totalorder 1, %s22
      %p285 = scmp.lt.s32.totalorder %s22, 3
      %p286 = pnand %p284, %p285
      %p287 = pneg %p286
      // Predicated region
      $region33: #{tpu_custom_call.1} parent=5 // pred_check
        _
      $region34: #{tpu_custom_call.1} parent=5 // pred_check_branch
        %289 = sbr.rel (%p286) target = $region36
      $region35: #{tpu_custom_call.1} parent=5 // pred_region
        %s290 = ssub.s32 %s22, 1
        %s291 = sand.u32 %s49, 1
        %s292 = scalar_lea.sflag [#allocation3], %s291
        %s293 = sand.u32 %s49, 1
        %s294 = smul.addr %s293, 8
        %s295 = scalar_lea.vmem [#allocation2], %s294
        // Predicated region
        $region37: #{tpu_custom_call.1} parent=35 // pred_check
          %p296 = pneg %p62
        $region38: #{tpu_custom_call.1} parent=35 // pred_check_branch
          %298 = sbr.rel (%p296) target = $region40
        $region39: #{tpu_custom_call.1} parent=35 // pred_region
          %299 = dma.done %s292, 128
        $region40: #{tpu_custom_call.1} parent=35 // pred_fallthru
          _
        %s300 = sand.u32 %s79, 1
        %s301 = scalar_lea.sflag [#allocation6], %s300
        %s302 = sand.u32 %s79, 1
        %s303 = smul.addr %s302, 8
        %s304 = scalar_lea.vmem [#allocation5], %s303
        // Predicated region
        $region41: #{tpu_custom_call.1} parent=35 // pred_check
          %p305 = pneg %p92
        $region42: #{tpu_custom_call.1} parent=35 // pred_check_branch
          %307 = sbr.rel (%p305) target = $region44
        $region43: #{tpu_custom_call.1} parent=35 // pred_region
          %308 = dma.done %s301, 128
        $region44: #{tpu_custom_call.1} parent=35 // pred_fallthru
          _
        %s309 = sand.u32 %s49, 1
        %s310 = scalar_lea.sflag [#allocation3], %s309
        %s311 = sand.u32 %s49, 1
        %s312 = smul.addr %s311, 8
        %s313 = scalar_lea.vmem [#allocation2], %s312
        %p314 = pneg %p62
        %p315 = pneg %p59
        %s316 = sand.u32 %s79, 1
        %s317 = scalar_lea.sflag [#allocation6], %s316
        %s318 = sand.u32 %s79, 1
        %s319 = smul.addr %s318, 8
        %s320 = scalar_lea.vmem [#allocation5], %s319
        %p321 = pneg %p92
        %p322 = pneg %p89
        %p323 = pneg %p113
        %p324 = pneg %p110
        %p325 = pneg %p134
        %p326 = pneg %p131
        %p327 = pneg %p162
        %p328 = pneg %p159
        %s329 = sand.u32 %s149, 1
        %s330 = scalar_lea.sflag [#allocation4], %s329
        %s331 = sand.u32 %s149, 1
        %s332 = smul.addr %s331, 8
        %s333 = scalar_lea.vmem [#allocation7], %s332
        %p334 = pneg %p190
        %p335 = pneg %p187
        %p336 = scmp.lt.s32.totalorder %s31, 1
        %s337 = scalar_select %p336, %s31, 1
        %p338 = scmp.lt.s32.totalorder %s32, 0
        %s339 = scalar_select %p338, %s32, 0
        %s340 = sadd.s32 %s339, %s337
        %s341 = smul.addr %s340, 8
        %s342 = scalar_lea.vmem %s5, %s341
        %p343 = pneg %p218
        %p344 = pneg %p215
        %p345 = scmp.lt.s32.totalorder %s31, 1
        %s346 = scalar_select %p345, %s31, 1
        %p347 = scmp.lt.s32.totalorder %s32, 0
        %s348 = scalar_select %p347, %s32, 0
        %s349 = sadd.s32 %s348, %s346
        %s350 = smul.addr %s349, 8
        %s351 = scalar_lea.vmem %s6, %s350
        %s352 = sadd.s32 %s32, 1
        %p353 = scmp.lt.s32.totalorder %s31, 1
        %s354 = scalar_select %p353, %s31, 1
        %p355 = scmp.lt.s32.totalorder %s32, 0
        %s356 = scalar_select %p355, %s32, 0
        %s357 = sadd.s32 %s356, %s354
        %s358 = smul.addr %s357, 8
        %s359 = scalar_lea.vmem %s5, %s358
        %p360 = scmp.lt.s32.totalorder %s31, 1
        %s361 = scalar_select %p360, %s31, 1
        %p362 = scmp.lt.s32.totalorder %s32, 0
        %s363 = scalar_select %p362, %s32, 0
        %s364 = sadd.s32 %s363, %s361
        %s365 = smul.addr %s364, 8
        %s366 = scalar_lea.vmem %s6, %s365
        %v367 = vld [vmem:[%s295] sm:$0xff]
        %v368 = vld [vmem:[%s304] sm:$0xff]
        %371 = vrot.lane.b32.xlu0 %v367, 127
        %v372 = vpop.permute.xlu0 %371
        %373 = vrot.lane.b32.xlu0 %v368, 127
        %v374 = vpop.permute.xlu0 %373
        %vm375 = vcmask 1039360
        %v376 = vsel %vm375, %v372, %v374
        %378 = vrot.lane.b32.xlu0 %v367, 126
        %v379 = vpop.permute.xlu0 %378
        %380 = vrot.lane.b32.xlu0 %v368, 126
        %v381 = vpop.permute.xlu0 %380
        %vm382 = vcmask 1031168
        %v383 = vsel %vm382, %v379, %v381
        %385 = vrot.lane.b32.xlu0 %v367, 125
        %v386 = vpop.permute.xlu0 %385
        %387 = vrot.lane.b32.xlu0 %v368, 125
        %v388 = vpop.permute.xlu0 %387
        %vm389 = vcmask 1022976
        %v390 = vsel %vm389, %v386, %v388
        %392 = vrot.lane.b32.xlu0 %v367, 124
        %v393 = vpop.permute.xlu0 %392
        %394 = vrot.lane.b32.xlu0 %v368, 124
        %v395 = vpop.permute.xlu0 %394
        %vm396 = vcmask 1014784
        %v397 = vsel %vm396, %v393, %v395
        %v399 = vld [vmem:[%s2] sm:$0xff]
        %v400 = vld [vmem:[%s3] sm:$0xff]
        %402 = vset.pattern.permute.xlu0 0
        %403 = vperm.xlu0 %402, %v400
        %v404 = vpop.permute.xlu0 %403
        %vm406 = vcmask 326656
        %v408 = vsel %vm406, %v399, 0
        %410 = vmatprep.subr.mxu0 0.0
        %411 = vmatpush1.msra.mxu0 %v367
        %412 = vmatprep.subr.mxu0 0.0
        %413 = vmatpush1.msra.mxu0 %v376
        %414 = vmatprep.subr.mxu0 0.0
        %415 = vmatpush1.msra.mxu0 %v383
        %416 = vmatprep.subr.mxu0 0.0
        %417 = vmatpush1.msra.mxu0 %v390
        %418 = vmatprep.subr.mxu0 0.0
        %419 = vmatpush1.msra.mxu0 %v397
        %420 = vmatprep.subr.mxu0 0.0
        %421 = vmatpush1.msra.mxu0 0.0
        %422 = vmatprep.subr.mxu0 0.0
        %423 = vmatpush1.msra.mxu0 0.0
        %424 = vmatprep.subr.mxu0 0.0
        %425 = vmatpush1.msra.mxu0 0.0
        %426 = vmatprep.subr.mxu0 0.0
        %427 = vmatpush1.msra.mxu0 0.0
        %428 = vmatprep.subr.mxu0 0.0
        %429 = vmatpush1.msra.mxu0 0.0
        %430 = vmatprep.subr.mxu0 0.0
        %431 = vmatpush1.msra.mxu0 0.0
        %432 = vmatprep.subr.mxu0 0.0
        %433 = vmatpush1.msra.mxu0 0.0
        %434 = vmatprep.subr.mxu0 0.0
        %435 = vmatpush1.msra.mxu0 0.0
        %436 = vmatprep.subr.mxu0 0.0
        %437 = vmatpush1.msra.mxu0 0.0
        %438 = vmatprep.subr.mxu0 0.0
        %439 = vmatpush1.msra.mxu0 0.0
        %440 = vmatprep.subr.mxu0 0.0
        %441 = vmatpush1.msra.mxu0 0.0
        %442 = vmatprep.subr.mxu0 0.0
        %443 = vmatpush1.msra.mxu0 0.0
        %444 = vmatprep.subr.mxu0 0.0
        %445 = vmatpush1.msra.mxu0 0.0
        %446 = vmatprep.subr.mxu0 0.0
        %447 = vmatpush1.msra.mxu0 0.0
        %448 = vmatprep.subr.mxu0 0.0
        %449 = vmatpush1.msra.mxu0 0.0
        %450 = vmatprep.subr.mxu0 0.0
        %451 = vmatpush1.msra.mxu0 0.0
        %452 = vmatprep.subr.mxu0 0.0
        %453 = vmatpush1.msra.mxu0 0.0
        %454 = vmatprep.subr.mxu0 0.0
        %455 = vmatpush1.msra.mxu0 0.0
        %456 = vmatprep.subr.mxu0 0.0
        %457 = vmatpush1.msra.mxu0 0.0
        %458 = vmatprep.subr.mxu0 0.0
        %459 = vmatpush1.msra.mxu0 0.0
        %460 = vmatprep.subr.mxu0 0.0
        %461 = vmatpush1.msra.mxu0 0.0
        %462 = vmatprep.subr.mxu0 0.0
        %463 = vmatpush1.msra.mxu0 0.0
        %464 = vmatprep.subr.mxu0 0.0
        %465 = vmatpush1.msra.mxu0 0.0
        %466 = vmatprep.subr.mxu0 0.0
        %467 = vmatpush1.msra.mxu0 0.0
        %468 = vmatprep.subr.mxu0 0.0
        %469 = vmatpush1.msra.mxu0 0.0
        %470 = vmatprep.subr.mxu0 0.0
        %471 = vmatpush1.msra.mxu0 0.0
        %472 = vmatprep.subr.mxu0 0.0
        %473 = vmatpush1.msra.mxu0 0.0
        %474 = vmatprep.mubr.f32.mxu0 0.0
        %475 = vmatmul.mubr.f32.gmra.mrb[0].mxu0 %v408
        %v476 = vpop.f32.mrb[0].mxu0
        %v477 = vadd.f32 %v404, %v476
        %v478 = vpop.f32.mrb[0].mxu0
        %479 = vdwg.mxu0
        %s480 = smul.u32 %s32, 128
        %v481 = vlaneseq
        %v482 = vand.u32 %v481, 127
        %v483 = vstv %s480
        %v484 = vadd.s32 %v483, %v482
        %vm485 = vcmp.lt.s32.totalorder %v484, 36
        %v486 = vsel %vm485, %v477, 0.0
        %487 = vadd.xlane.f32.xlu0 %v486
        %v488 = vpop.xlane.xlu0 %487
        %vm489 = vcmask 7168
        %490 = vst.msk [vmem:[%s359] sm:$0xff] %vm489, %v488
        %v491 = vmul.f32 %v486, %v486
        %492 = vadd.xlane.f32.xlu0 %v491
        %v493 = vpop.xlane.xlu0 %492
        %494 = vst.msk [vmem:[%s366] sm:$0xff] %vm489, %v493
        %495 = vst [vmem:[%s333] sm:$0xff] %v477
        %s496 = sand.u32 %s149, 1
        %s497 = scalar_lea.sflag [#allocation4], %s496
        %s498 = sand.u32 %s149, 1
        %s499 = smul.addr %s498, 8
        %s500 = scalar_lea.vmem [#allocation7], %s499
        %p501 = scmp.lt.s32.totalorder %s31, 1
        %s502 = scalar_select %p501, %s31, 1
        %p503 = scmp.lt.s32.totalorder %s32, 0
        %s504 = scalar_select %p503, %s32, 0
        %s505 = sadd.s32 %s504, %s502
        %s506 = smul.addr %s505, 8
        %s507 = scalar_lea.vmem %s5, %s506
        %p508 = scmp.lt.s32.totalorder %s31, 1
        %s509 = scalar_select %p508, %s31, 1
        %p510 = scmp.lt.s32.totalorder %s32, 0
        %s511 = scalar_select %p510, %s32, 0
        %s512 = sadd.s32 %s511, %s509
        %s513 = smul.addr %s512, 8
        %s514 = scalar_lea.vmem %s6, %s513
        // Predicated region
        $region45: #{tpu_custom_call.1} parent=35 // pred_check
          %p515 = pneg %p159
        $region46: #{tpu_custom_call.1} parent=35 // pred_check_branch
          %517 = sbr.rel (%p515) target = $region48
        $region47: #{tpu_custom_call.1} parent=35 // pred_region
          %s519 = ssub.s32 128, 128
          %520 = vsyncadd %s497, %s519
          %s521 = sadd.s32 %s32, %s31
          %s522 = smul.addr %s521, 128
          %s523 = scalar_lea.hbm %s4, %s522
          %s525 = sshll.u32 %s500, 4
          %s526 = int_to_ptr.vmem [resolvable:$true] %s525
          %528 = dma.vmem_to_hbm [thread:$0]  %s526, 128, %s523, %s497
        $region48: #{tpu_custom_call.1} parent=35 // pred_fallthru
          _
        // Predicated region
        $region49: #{tpu_custom_call.1} parent=35 // pred_check
          %p529 = pneg %p187
        $region50: #{tpu_custom_call.1} parent=35 // pred_check_branch
          %531 = sbr.rel (%p529) target = $region52
        $region51: #{tpu_custom_call.1} parent=35 // pred_region
          _
        $region52: #{tpu_custom_call.1} parent=35 // pred_fallthru
          _
        // Predicated region
        $region53: #{tpu_custom_call.1} parent=35 // pred_check
          %p532 = pneg %p215
        $region54: #{tpu_custom_call.1} parent=35 // pred_check_branch
          %534 = sbr.rel (%p532) target = $region56
        $region55: #{tpu_custom_call.1} parent=35 // pred_region
          _
        $region56: #{tpu_custom_call.1} parent=35 // pred_fallthru
          _
      $region36: #{tpu_custom_call.1} parent=5 // pred_fallthru
        _
      %p535 = scmp.le.s32.totalorder 2, %s22
      // Predicated region
      $region57: #{tpu_custom_call.1} parent=5 // pred_check
        %p536 = pneg %p535
      $region58: #{tpu_custom_call.1} parent=5 // pred_check_branch
        %538 = sbr.rel (%p536) target = $region60
      $region59: #{tpu_custom_call.1} parent=5 // pred_region
        %s539 = ssub.s32 %s22, 2
        // Predicated region
        $region61: #{tpu_custom_call.1} parent=59 // pred_check
          %p540 = pneg %p165
        $region62: #{tpu_custom_call.1} parent=59 // pred_check_branch
          %542 = sbr.rel (%p540) target = $region64
        $region63: #{tpu_custom_call.1} parent=59 // pred_region
          %s543 = sand.u32 %s150, 1
          %s544 = scalar_lea.sflag [#allocation4], %s543
          %s545 = sand.u32 %s150, 1
          %s546 = smul.addr %s545, 8
          %s547 = scalar_lea.vmem [#allocation7], %s546
          %548 = dma.done %s544, 128
        $region64: #{tpu_custom_call.1} parent=59 // pred_fallthru
          _
        // Predicated region
        $region65: #{tpu_custom_call.1} parent=59 // pred_check
          %p549 = pneg %p193
        $region66: #{tpu_custom_call.1} parent=59 // pred_check_branch
          %551 = sbr.rel (%p549) target = $region68
        $region67: #{tpu_custom_call.1} parent=59 // pred_region
          %p552 = scmp.lt.s32.totalorder %s33, 1
          %s553 = scalar_select %p552, %s33, 1
          %p554 = scmp.lt.s32.totalorder %s34, 0
          %s555 = scalar_select %p554, %s34, 0
          %s556 = sadd.s32 %s555, %s553
          %s557 = smul.addr %s556, 8
          %s558 = scalar_lea.vmem %s5, %s557
        $region68: #{tpu_custom_call.1} parent=59 // pred_fallthru
          _
        // Predicated region
        $region69: #{tpu_custom_call.1} parent=59 // pred_check
          %p559 = pneg %p221
        $region70: #{tpu_custom_call.1} parent=59 // pred_check_branch
          %561 = sbr.rel (%p559) target = $region72
        $region71: #{tpu_custom_call.1} parent=59 // pred_region
          %p562 = scmp.lt.s32.totalorder %s33, 1
          %s563 = scalar_select %p562, %s33, 1
          %p564 = scmp.lt.s32.totalorder %s34, 0
          %s565 = scalar_select %p564, %s34, 0
          %s566 = sadd.s32 %s565, %s563
          %s567 = smul.addr %s566, 8
          %s568 = scalar_lea.vmem %s6, %s567
        $region72: #{tpu_custom_call.1} parent=59 // pred_fallthru
          _
      $region60: #{tpu_custom_call.1} parent=5 // pred_fallthru
        _
    $region6: #{tpu_custom_call.1} parent=1 // loop_footer
      %s26 = sadd.s32 1, %s22
    $region7: #{tpu_custom_call.1} parent=1 // loop_footer_branch
      %21 = sbr.rel target = $region3
    $region8: #{tpu_custom_call.1} parent=1 // loop_exit
      _
    %569 = vsyncpa [#allocation3], 1
    %s570 = scalar_lea.sflag [#allocation3], 1
    %571 = vsyncpa %s570, 1
    %572 = vsyncpa [#allocation6], 1
    %s573 = scalar_lea.sflag [#allocation6], 1
    %574 = vsyncpa %s573, 1
    %575 = vsyncpa [#allocation4], 1
    %s576 = scalar_lea.sflag [#allocation4], 1
    %577 = vsyncpa %s576, 1

</llo_original>
